<compile_context>
chip_gen: v7x
topology: tpu7x:2x2x1
jax: 0.10.0
libtpu: 0.0.40
codegen_flags: <defaults>
</compile_context>

<pallas_src>
import functools

import jax
import jax.numpy as jnp
from jax.experimental import pallas as pl
from jax.experimental.pallas import tpu as pltpu

MODEL_DIM = 64
HIDDEN_DIM = 4 * MODEL_DIM            # 256
DROPOUT_P = 0.2
_KEEP_SCALE = 1.0 / (1.0 - DROPOUT_P)
_DROP_THRESHOLD = int(DROPOUT_P * (1 << 32))   # uniform u32 bits < thr -> drop


def _round_up(n, m):
    return ((n + m - 1) // m) * m


def _ffn_kernel(x_ref, w1_ref, b1_ref, w2_ref, b2_ref, *rest, training, matmul_dtype):
    # x_ref: (tm, D), w1_ref: (D, 4D), b1_ref: (1, 4D), w2_ref: (4D, D),
    # b2_ref: (1, D), [bits_ref: (tm, D) if training], o_ref: (tm, D)
    if training:
        bits_ref, o_ref = rest
    else:
        (o_ref,) = rest

    x = x_ref[...]
    w1 = w1_ref[...]
    w2 = w2_ref[...]
    if matmul_dtype is not None:
        # bf16 operands, f32 accumulation: v6e/v7x MXU fast path.
        x = x.astype(matmul_dtype)
        w1 = w1.astype(matmul_dtype)
        w2 = w2.astype(matmul_dtype)

    h = jnp.dot(x, w1, preferred_element_type=jnp.float32) + b1_ref[...]
    h = jnp.maximum(h, 0.0)                                          # ReLU
    if matmul_dtype is not None:
        h = h.astype(matmul_dtype)
    y = jnp.dot(h, w2, preferred_element_type=jnp.float32) + b2_ref[...]

    if training:
        # Inverted dropout: keep with prob 1-p, scale kept values by 1/(1-p).
        # Integer threshold compare on raw u32 bits (no shift / int->float / mul),
        # single select with the scale factored outside the where.
        keep = bits_ref[...] >= jnp.uint32(_DROP_THRESHOLD)
        y = jnp.where(keep, y, 0.0) * jnp.float32(_KEEP_SCALE)

    o_ref[...] = y.astype(o_ref.dtype)


def feed_forward(x, params, *, training=False, dropout_key=None,
                 tile_rows=512, matmul_dtype=None):
    """x: (B, T, MODEL_DIM) float32. Returns same shape/dtype."""
    w1, b1, w2, b2 = params
    B, T, D = x.shape
    assert D == MODEL_DIM
    N = B * T

    # Tile rows: big (default 512) for MXU fill / low per-step overhead, but
    # never bigger than needed for small inputs; always a multiple of 8.
    tm = _round_up(min(tile_rows, _round_up(N, 8)), 8)
    Np = _round_up(N, tm)

    x2 = x.reshape(N, D)
    if Np != N:
        x2 = jnp.pad(x2, ((0, Np - N), (0, 0)))

    inputs = [x2, w1, b1, w2, b2]
    in_specs = [
        pl.BlockSpec((tm, D), lambda i: (i, 0)),                 # x tile
        # Grid-invariant operands (index_map always (0,0)): resident in VMEM.
        pl.BlockSpec((D, HIDDEN_DIM), lambda i: (0, 0)),         # W1
        pl.BlockSpec((1, HIDDEN_DIM), lambda i: (0, 0)),         # b1
        pl.BlockSpec((HIDDEN_DIM, D), lambda i: (0, 0)),         # W2
        pl.BlockSpec((1, D), lambda i: (0, 0)),                  # b2
    ]

    if training:
        if dropout_key is None:
            raise ValueError("training=True requires dropout_key")
        # TODO(synk): on real TPU, pltpu.prng_random_bits inside the kernel would
        # avoid this HBM round-trip, but it has no interpret-mode lowering.
        bits = jax.random.bits(dropout_key, (Np, D), jnp.uint32)
        inputs.append(bits)
        in_specs.append(pl.BlockSpec((tm, D), lambda i: (i, 0)))  # dropout bits

    weight_bytes = 4 * (D * HIDDEN_DIM + HIDDEN_DIM * D + HIDDEN_DIM + D)
    cost = pl.CostEstimate(
        flops=4 * Np * D * HIDDEN_DIM,                # two (Np,64)x(64,256)-class matmuls
        transcendentals=0,
        bytes_accessed=2 * Np * D * 4 + weight_bytes + (Np * D * 4 if training else 0),
    )

    kernel = functools.partial(_ffn_kernel, training=training, matmul_dtype=matmul_dtype)

    out = pl.pallas_call(
        kernel,
        out_shape=jax.ShapeDtypeStruct((Np, D), x.dtype),
        grid_spec=pltpu.PrefetchScalarGridSpec(
            num_scalar_prefetch=0,
            grid=(Np // tm,),
            in_specs=in_specs,
            out_specs=pl.BlockSpec((tm, D), lambda i: (i, 0)),
        ),
        compiler_params=pltpu.CompilerParams(dimension_semantics=("parallel",)),
        cost_estimate=cost,
    )(*inputs)

    if Np != N:
        out = out[:N]
    return out.reshape(B, T, D)


def init_params(key):
    """Deterministic init matching nn.Linear's default U(-1/sqrt(fan_in), 1/sqrt(fan_in))."""
    k1, k2, k3, k4 = jax.random.split(key, 4)
    lim1 = 1.0 / (MODEL_DIM ** 0.5)
    lim2 = 1.0 / (HIDDEN_DIM ** 0.5)
    # stored as (in_features, out_features) so the kernel does x @ W
    w1 = jax.random.uniform(k1, (MODEL_DIM, HIDDEN_DIM), jnp.float32, -lim1, lim1)
    b1 = jax.random.uniform(k2, (1, HIDDEN_DIM), jnp.float32, -lim1, lim1)
    w2 = jax.random.uniform(k3, (HIDDEN_DIM, MODEL_DIM), jnp.float32, -lim2, lim2)
    b2 = jax.random.uniform(k4, (1, MODEL_DIM), jnp.float32, -lim2, lim2)
    return w1, b1, w2, b2


if __name__ == "__main__":
    key = jax.random.PRNGKey(0)
    k_params, k_x, k_drop = jax.random.split(key, 3)
    params = init_params(k_params)
    w1, b1, w2, b2 = params

    B, T = 2, 8                                   # small shapes; D = model_dim = 64
    x = jax.random.normal(k_x, (B, T, MODEL_DIM), jnp.float32)

    def ref_fn(xx):
        h = jnp.maximum(xx.reshape(-1, MODEL_DIM) @ w1 + b1, 0.0)
        return (h @ w2 + b2).reshape(xx.shape)

    # Eval mode (dropout = identity), f32 matmuls: match pure-JAX reference.
    out_eval = jax.block_until_ready(feed_forward(x, params, training=False))
    assert out_eval.shape == x.shape and out_eval.dtype == x.dtype
    assert jnp.allclose(out_eval, ref_fn(x), atol=1e-4, rtol=1e-4)

    # Ragged N (B*T not a multiple of 8) exercises the pad/tail path.
    x_odd = jax.random.normal(k_x, (2, 7, MODEL_DIM), jnp.float32)
    out_odd = jax.block_until_ready(feed_forward(x_odd, params, training=False))
    assert jnp.allclose(out_odd, ref_fn(x_odd), atol=1e-4, rtol=1e-4)

    # bf16-operand matmuls with f32 accumulation (v6e/v7x fast path): loose tol.
    out_bf16 = jax.block_until_ready(
        feed_forward(x, params, training=False, matmul_dtype=jnp.bfloat16))
    assert jnp.allclose(out_bf16, ref_fn(x), atol=5e-2, rtol=5e-2)

    # Train mode: inverted dropout. Kept entries equal ref * 1/(1-p); dropped are 0.
    out_train = jax.block_until_ready(
        feed_forward(x, params, training=True, dropout_key=k_drop))
    assert out_train.shape == x.shape and out_train.dtype == x.dtype
    ref_scaled = ref_fn(x) * _KEEP_SCALE
    kept = out_train != 0.0
    assert jnp.allclose(jnp.where(kept, out_train, 0.0),
                        jnp.where(kept, ref_scaled, 0.0), atol=1e-4, rtol=1e-4)

    print("KERNEL_OK")
</pallas_src>

<mosaic_0001>
module attributes {stable_mosaic.version = 11 : i64} {
  func.func @_ffn_kernel(%arg0: i32, %arg1: memref<16x64xf32, #tpu.memory_space<vmem>>, %arg2: memref<64x256xf32, #tpu.memory_space<vmem>>, %arg3: memref<1x256xf32, #tpu.memory_space<vmem>>, %arg4: memref<256x64xf32, #tpu.memory_space<vmem>>, %arg5: memref<1x64xf32, #tpu.memory_space<vmem>>, %arg6: memref<16x64xf32, #tpu.memory_space<vmem>>) attributes {dimension_semantics = [#tpu.dimension_semantics<parallel>], iteration_bounds = array<i64: 1>, scalar_prefetch = 0 : i64, scratch_operands = 0 : i64, tpu.core_type = #tpu.core_type<tc>, window_params = [{transform_indices = @transform_0, window_bounds = array<i64: 16, 64>}, {pipeline_mode = #tpu.pipeline_mode<synchronous>, transform_indices = @transform_1, window_bounds = array<i64: 64, 256>}, {pipeline_mode = #tpu.pipeline_mode<synchronous>, transform_indices = @transform_2, window_bounds = array<i64: 1, 256>}, {pipeline_mode = #tpu.pipeline_mode<synchronous>, transform_indices = @transform_3, window_bounds = array<i64: 256, 64>}, {pipeline_mode = #tpu.pipeline_mode<synchronous>, transform_indices = @transform_4, window_bounds = array<i64: 1, 64>}, {transform_indices = @transform_5, window_bounds = array<i64: 16, 64>}]} {
    %c0 = arith.constant 0 : index
    %c0_0 = arith.constant 0 : index
    %0 = vector.load %arg1[%c0, %c0_0] : memref<16x64xf32, #tpu.memory_space<vmem>>, vector<16x64xf32>
    %c0_1 = arith.constant 0 : index
    %c0_2 = arith.constant 0 : index
    %1 = vector.load %arg2[%c0_1, %c0_2] : memref<64x256xf32, #tpu.memory_space<vmem>>, vector<64x256xf32>
    %c0_3 = arith.constant 0 : index
    %c0_4 = arith.constant 0 : index
    %2 = vector.load %arg4[%c0_3, %c0_4] : memref<256x64xf32, #tpu.memory_space<vmem>>, vector<256x64xf32>
    %cst = arith.constant dense<0.000000e+00> : vector<16x256xf32>
    %3 = tpu.matmul %0, %1, %cst {dimension_numbers = #tpu.dot_dimension_numbers<[1], [0], [0], [1], [0, 0, 1, 1], [], []>} : vector<16x64xf32>, vector<64x256xf32>, vector<16x256xf32> -> vector<16x256xf32>
    %c0_5 = arith.constant 0 : index
    %c0_6 = arith.constant 0 : index
    %4 = vector.load %arg3[%c0_5, %c0_6] : memref<1x256xf32, #tpu.memory_space<vmem>>, vector<1x256xf32>
    %5 = vector.broadcast %4 : vector<1x256xf32> to vector<16x256xf32>
    %6 = arith.addf %3, %5 : vector<16x256xf32>
    %cst_7 = arith.constant 0.000000e+00 : f32
    %7 = vector.broadcast %cst_7 : f32 to vector<16x256xf32>
    %8 = arith.maximumf %6, %7 : vector<16x256xf32>
    %cst_8 = arith.constant dense<0.000000e+00> : vector<16x64xf32>
    %9 = tpu.matmul %8, %2, %cst_8 {dimension_numbers = #tpu.dot_dimension_numbers<[1], [0], [0], [1], [0, 0, 1, 1], [], []>} : vector<16x256xf32>, vector<256x64xf32>, vector<16x64xf32> -> vector<16x64xf32>
    %c0_9 = arith.constant 0 : index
    %c0_10 = arith.constant 0 : index
    %10 = vector.load %arg5[%c0_9, %c0_10] : memref<1x64xf32, #tpu.memory_space<vmem>>, vector<1x64xf32>
    %11 = vector.broadcast %10 : vector<1x64xf32> to vector<16x64xf32>
    %12 = arith.addf %9, %11 : vector<16x64xf32>
    %c0_11 = arith.constant 0 : index
    %c0_12 = arith.constant 0 : index
    %13 = vector.load %arg6[%c0_11, %c0_12] : memref<16x64xf32, #tpu.memory_space<vmem>>, vector<16x64xf32>
    tpu.vector_store %arg6[%c0_11, %c0_12], %12 {strides = array<i32>} : memref<16x64xf32, #tpu.memory_space<vmem>>, vector<16x64xf32>,
    return
  }
  func.func @transform_0(%arg0: i32) -> (i32, i32) {
    %c0_i32 = arith.constant 0 : i32
    %c0_i32_0 = arith.constant 0 : i32
    return %arg0, %c0_i32 : i32, i32
  }
  func.func @transform_1(%arg0: i32) -> (i32, i32) {
    %c0_i32 = arith.constant 0 : i32
    %c0_i32_0 = arith.constant 0 : i32
    %c0_i32_1 = arith.constant 0 : i32
    return %c0_i32, %c0_i32_0 : i32, i32
  }
  func.func @transform_2(%arg0: i32) -> (i32, i32) {
    %c0_i32 = arith.constant 0 : i32
    %c0_i32_0 = arith.constant 0 : i32
    %c0_i32_1 = arith.constant 0 : i32
    return %c0_i32, %c0_i32_0 : i32, i32
  }
  func.func @transform_3(%arg0: i32) -> (i32, i32) {
    %c0_i32 = arith.constant 0 : i32
    %c0_i32_0 = arith.constant 0 : i32
    %c0_i32_1 = arith.constant 0 : i32
    return %c0_i32, %c0_i32_0 : i32, i32
  }
  func.func @transform_4(%arg0: i32) -> (i32, i32) {
    %c0_i32 = arith.constant 0 : i32
    %c0_i32_0 = arith.constant 0 : i32
    %c0_i32_1 = arith.constant 0 : i32
    return %c0_i32, %c0_i32_0 : i32, i32
  }
  func.func @transform_5(%arg0: i32) -> (i32, i32) {
    %c0_i32 = arith.constant 0 : i32
    %c0_i32_0 = arith.constant 0 : i32
    return %arg0, %c0_i32 : i32, i32
  }
}

</mosaic_0001>

<llo_original>
// kernel: tpu_custom_call.1
$region0: #{tpu_custom_call.1}
  #allocation0 [shape = 'u32[]', space=smem, size = 0x4, offset = 0x4, fixed_abs, tag = 'smem constant byte address 0x4 - core index']
  #allocation1 [shape = 'u32[144,128]{1,0:T(1,128)}', space=vmem, size = 0x12000, scoped, tag = 'internal scratch']
  %s0 = inlined_call_operand.vmem [shape: f32[16,64], index: 0, kind: input, shape index: {}]
  %s1 = inlined_call_operand.vmem [shape: f32[64,256], index: 1, kind: input, shape index: {}]
  %s2 = inlined_call_operand.vmem [shape: f32[1,256], index: 2, kind: input, shape index: {}]
  %s3 = inlined_call_operand.vmem [shape: f32[256,64], index: 3, kind: input, shape index: {}]
  %s4 = inlined_call_operand.vmem [shape: f32[1,64], index: 4, kind: input, shape index: {}]
  %s5 = inlined_call_operand.hbm [shape: f32[16,64], index: 5, kind: output, shape index: {}]
  %s6 = sld [smem:[#allocation0]]
  $region30: #{tpu_custom_call.1} parent=0
    _
  %s8 = ssub.s32 1, %s6
  %s9 = scalar_select 0, %s8, %s6
  $region1: #{tpu_custom_call.1} parent=0
    #allocation2 [shape = 'u8[8192]{0}', space=vmem, size = 0x2000, scoped, tag = 'output window, operand 0, single buffered']
    #allocation3 [shape = 's32[1]{0}', space=sflag, size = 0x4, scoped, tag = 'scoped memory for tpu_custom_call.1']
    %10 = vsyncpa [#allocation3], 0
    // Predicated region
    $region2: #{tpu_custom_call.1} parent=1 // pred_check
      _
    $region3: #{tpu_custom_call.1} parent=1 // pred_check_branch
      %12 = sbr.rel (0) target = $region5
    $region4: #{tpu_custom_call.1} parent=1 // pred_region
      _
    $region5: #{tpu_custom_call.1} parent=1 // pred_fallthru
      _
    // Predicated region
    $region6: #{tpu_custom_call.1} parent=1 // pred_check
      _
    $region7: #{tpu_custom_call.1} parent=1 // pred_check_branch
      %14 = sbr.rel (0) target = $region9
    $region8: #{tpu_custom_call.1} parent=1 // pred_region
      _
    $region9: #{tpu_custom_call.1} parent=1 // pred_fallthru
      _
    // Predicated region
    $region10: #{tpu_custom_call.1} parent=1 // pred_check
      _
    $region11: #{tpu_custom_call.1} parent=1 // pred_check_branch
      %16 = sbr.rel (0) target = $region13
    $region12: #{tpu_custom_call.1} parent=1 // pred_region
      _
    $region13: #{tpu_custom_call.1} parent=1 // pred_fallthru
      _
    // Predicated region
    $region14: #{tpu_custom_call.1} parent=1 // pred_check
      _
    $region15: #{tpu_custom_call.1} parent=1 // pred_check_branch
      %18 = sbr.rel (0) target = $region17
    $region16: #{tpu_custom_call.1} parent=1 // pred_region
      _
    $region17: #{tpu_custom_call.1} parent=1 // pred_fallthru
      _
    // Predicated region
    $region18: #{tpu_custom_call.1} parent=1 // pred_check
      _
    $region19: #{tpu_custom_call.1} parent=1 // pred_check_branch
      %20 = sbr.rel (0) target = $region21
    $region20: #{tpu_custom_call.1} parent=1 // pred_region
      _
    $region21: #{tpu_custom_call.1} parent=1 // pred_fallthru
      _
    %v21 = vld [vmem:[%s0] sm:$0xff]
    %v22 = vld [vmem:[%s0 + $0x8] sm:$0xff]
    %v23 = vld [vmem:[%s1] sm:$0xff]
    %v24 = vld [vmem:[%s1 + $0x8] sm:$0xff]
    %v25 = vld [vmem:[%s1 + $0x10] sm:$0xff]
    %v26 = vld [vmem:[%s1 + $0x18] sm:$0xff]
    %v27 = vld [vmem:[%s1 + $0x20] sm:$0xff]
    %v28 = vld [vmem:[%s1 + $0x28] sm:$0xff]
    %v29 = vld [vmem:[%s1 + $0x30] sm:$0xff]
    %v30 = vld [vmem:[%s1 + $0x38] sm:$0xff]
    %v31 = vld [vmem:[%s1 + $0x40] sm:$0xff]
    %v32 = vld [vmem:[%s1 + $0x48] sm:$0xff]
    %v33 = vld [vmem:[%s1 + $0x50] sm:$0xff]
    %v34 = vld [vmem:[%s1 + $0x58] sm:$0xff]
    %v35 = vld [vmem:[%s1 + $0x60] sm:$0xff]
    %v36 = vld [vmem:[%s1 + $0x68] sm:$0xff]
    %v37 = vld [vmem:[%s1 + $0x70] sm:$0xff]
    %v38 = vld [vmem:[%s1 + $0x78] sm:$0xff]
    %v39 = vld [vmem:[%s3] sm:$0xff]
    %v40 = vld [vmem:[%s3 + $0x8] sm:$0xff]
    %v41 = vld [vmem:[%s3 + $0x10] sm:$0xff]
    %v42 = vld [vmem:[%s3 + $0x18] sm:$0xff]
    %v43 = vld [vmem:[%s3 + $0x20] sm:$0xff]
    %v44 = vld [vmem:[%s3 + $0x28] sm:$0xff]
    %v45 = vld [vmem:[%s3 + $0x30] sm:$0xff]
    %v46 = vld [vmem:[%s3 + $0x38] sm:$0xff]
    %v47 = vld [vmem:[%s3 + $0x40] sm:$0xff]
    %v48 = vld [vmem:[%s3 + $0x48] sm:$0xff]
    %v49 = vld [vmem:[%s3 + $0x50] sm:$0xff]
    %v50 = vld [vmem:[%s3 + $0x58] sm:$0xff]
    %v51 = vld [vmem:[%s3 + $0x60] sm:$0xff]
    %v52 = vld [vmem:[%s3 + $0x68] sm:$0xff]
    %v53 = vld [vmem:[%s3 + $0x70] sm:$0xff]
    %v54 = vld [vmem:[%s3 + $0x78] sm:$0xff]
    %v55 = vld [vmem:[%s3 + $0x80] sm:$0xff]
    %v56 = vld [vmem:[%s3 + $0x88] sm:$0xff]
    %v57 = vld [vmem:[%s3 + $0x90] sm:$0xff]
    %v58 = vld [vmem:[%s3 + $0x98] sm:$0xff]
    %v59 = vld [vmem:[%s3 + $0xa0] sm:$0xff]
    %v60 = vld [vmem:[%s3 + $0xa8] sm:$0xff]
    %v61 = vld [vmem:[%s3 + $0xb0] sm:$0xff]
    %v62 = vld [vmem:[%s3 + $0xb8] sm:$0xff]
    %v63 = vld [vmem:[%s3 + $0xc0] sm:$0xff]
    %v64 = vld [vmem:[%s3 + $0xc8] sm:$0xff]
    %v65 = vld [vmem:[%s3 + $0xd0] sm:$0xff]
    %v66 = vld [vmem:[%s3 + $0xd8] sm:$0xff]
    %v67 = vld [vmem:[%s3 + $0xe0] sm:$0xff]
    %v68 = vld [vmem:[%s3 + $0xe8] sm:$0xff]
    %v69 = vld [vmem:[%s3 + $0xf0] sm:$0xff]
    %v70 = vld [vmem:[%s3 + $0xf8] sm:$0xff]
    %v71 = vld [vmem:[%s2] sm:$0x3]
    %v73 = vlaneseq
    %v74 = vshrl.u32 %v73, 7
    %v75 = vsub.s32 0, %v74
    %v76 = vrot.slane %v71, %v75
    %v77 = vlaneseq
    %v78 = vshrl.u32 %v77, 7
    %v79 = vsub.s32 1, %v78
    %v80 = vrot.slane %v71, %v79
    %vm83 = vcmask 523264
    %v85 = vsel %vm83, %v21, 0
    %v88 = vsel %vm83, %v22, 0
    %90 = vmatprep.subr.mxu0 %v24
    %91 = vmatpush1.msra.mxu0 %v23
    %92 = vmatprep.subr.mxu0 %v26
    %93 = vmatpush1.msra.mxu0 %v25
    %94 = vmatprep.subr.mxu0 %v28
    %95 = vmatpush1.msra.mxu0 %v27
    %96 = vmatprep.subr.mxu0 %v30
    %97 = vmatpush1.msra.mxu0 %v29
    %98 = vmatprep.subr.mxu0 %v32
    %99 = vmatpush1.msra.mxu0 %v31
    %100 = vmatprep.subr.mxu0 %v34
    %101 = vmatpush1.msra.mxu0 %v33
    %102 = vmatprep.subr.mxu0 %v36
    %103 = vmatpush1.msra.mxu0 %v35
    %104 = vmatprep.subr.mxu0 %v38
    %105 = vmatpush1.msra.mxu0 %v37
    %106 = vmatprep.subr.mxu0 0.0
    %107 = vmatpush1.msra.mxu0 0.0
    %108 = vmatprep.subr.mxu0 0.0
    %109 = vmatpush1.msra.mxu0 0.0
    %110 = vmatprep.subr.mxu0 0.0
    %111 = vmatpush1.msra.mxu0 0.0
    %112 = vmatprep.subr.mxu0 0.0
    %113 = vmatpush1.msra.mxu0 0.0
    %114 = vmatprep.subr.mxu0 0.0
    %115 = vmatpush1.msra.mxu0 0.0
    %116 = vmatprep.subr.mxu0 0.0
    %117 = vmatpush1.msra.mxu0 0.0
    %118 = vmatprep.subr.mxu0 0.0
    %119 = vmatpush1.msra.mxu0 0.0
    %120 = vmatprep.subr.mxu0 0.0
    %121 = vmatpush1.msra.mxu0 0.0
    %122 = vmatprep.subr.mxu0 0.0
    %123 = vmatpush1.msra.mxu0 0.0
    %124 = vmatprep.subr.mxu0 0.0
    %125 = vmatpush1.msra.mxu0 0.0
    %126 = vmatprep.subr.mxu0 0.0
    %127 = vmatpush1.msra.mxu0 0.0
    %128 = vmatprep.subr.mxu0 0.0
    %129 = vmatpush1.msra.mxu0 0.0
    %130 = vmatprep.subr.mxu0 0.0
    %131 = vmatpush1.msra.mxu0 0.0
    %132 = vmatprep.subr.mxu0 0.0
    %133 = vmatpush1.msra.mxu0 0.0
    %134 = vmatprep.subr.mxu0 0.0
    %135 = vmatpush1.msra.mxu0 0.0
    %136 = vmatprep.subr.mxu0 0.0
    %137 = vmatpush1.msra.mxu0 0.0
    %138 = vmatprep.subr.mxu0 0.0
    %139 = vmatpush1.msra.mxu0 0.0
    %140 = vmatprep.subr.mxu0 0.0
    %141 = vmatpush1.msra.mxu0 0.0
    %142 = vmatprep.subr.mxu0 0.0
    %143 = vmatpush1.msra.mxu0 0.0
    %144 = vmatprep.subr.mxu0 0.0
    %145 = vmatpush1.msra.mxu0 0.0
    %146 = vmatprep.subr.mxu0 0.0
    %147 = vmatpush1.msra.mxu0 0.0
    %148 = vmatprep.subr.mxu0 0.0
    %149 = vmatpush1.msra.mxu0 0.0
    %150 = vmatprep.subr.mxu0 0.0
    %151 = vmatpush1.msra.mxu0 0.0
    %152 = vmatprep.subr.mxu0 0.0
    %153 = vmatpush1.msra.mxu0 0.0
    %154 = vmatprep.mubr.f32.mxu0 0.0
    %155 = vmatmul.mubr.f32.gmra.mrb[0].mxu0 %v85
    %v156 = vpop.f32.mrb[0].mxu0
    %v157 = vadd.f32 %v76, %v156
    %v158 = vpop.f32.mrb[0].mxu0
    %v159 = vadd.f32 %v80, %v158
    %160 = vmatprep.mubr.f32.mxu0 0.0
    %161 = vmatmul.mubr.f32.gmra.mrb[0].mxu0 %v88
    %v162 = vpop.f32.mrb[0].mxu0
    %v163 = vadd.f32 %v76, %v162
    %v164 = vpop.f32.mrb[0].mxu0
    %v165 = vadd.f32 %v80, %v164
    %166 = vdwg.mxu0
    %v167 = vmax.f32 %v157, 0.0
    %v168 = vmax.f32 %v159, 0.0
    %v169 = vmax.f32 %v163, 0.0
    %v170 = vmax.f32 %v165, 0.0
    %v171 = vld [vmem:[%s4] sm:$0x1]
    %v173 = vlaneseq
    %v174 = vshrl.u32 %v173, 7
    %v175 = vsub.s32 0, %v174
    %v176 = vrot.slane %v171, %v175
    %178 = vmatprep.subr.mxu0 0.0
    %179 = vmatpush1.msra.mxu0 %v39
    %180 = vmatprep.subr.mxu0 0.0
    %181 = vmatpush1.msra.mxu0 %v40
    %182 = vmatprep.subr.mxu0 0.0
    %183 = vmatpush1.msra.mxu0 %v41
    %184 = vmatprep.subr.mxu0 0.0
    %185 = vmatpush1.msra.mxu0 %v42
    %186 = vmatprep.subr.mxu0 0.0
    %187 = vmatpush1.msra.mxu0 %v43
    %188 = vmatprep.subr.mxu0 0.0
    %189 = vmatpush1.msra.mxu0 %v44
    %190 = vmatprep.subr.mxu0 0.0
    %191 = vmatpush1.msra.mxu0 %v45
    %192 = vmatprep.subr.mxu0 0.0
    %193 = vmatpush1.msra.mxu0 %v46
    %194 = vmatprep.subr.mxu0 0.0
    %195 = vmatpush1.msra.mxu0 %v47
    %196 = vmatprep.subr.mxu0 0.0
    %197 = vmatpush1.msra.mxu0 %v48
    %198 = vmatprep.subr.mxu0 0.0
    %199 = vmatpush1.msra.mxu0 %v49
    %200 = vmatprep.subr.mxu0 0.0
    %201 = vmatpush1.msra.mxu0 %v50
    %202 = vmatprep.subr.mxu0 0.0
    %203 = vmatpush1.msra.mxu0 %v51
    %204 = vmatprep.subr.mxu0 0.0
    %205 = vmatpush1.msra.mxu0 %v52
    %206 = vmatprep.subr.mxu0 0.0
    %207 = vmatpush1.msra.mxu0 %v53
    %208 = vmatprep.subr.mxu0 0.0
    %209 = vmatpush1.msra.mxu0 %v54
    %210 = vmatprep.subr.mxu0 0.0
    %211 = vmatpush1.msra.mxu0 %v55
    %212 = vmatprep.subr.mxu0 0.0
    %213 = vmatpush1.msra.mxu0 %v56
    %214 = vmatprep.subr.mxu0 0.0
    %215 = vmatpush1.msra.mxu0 %v57
    %216 = vmatprep.subr.mxu0 0.0
    %217 = vmatpush1.msra.mxu0 %v58
    %218 = vmatprep.subr.mxu0 0.0
    %219 = vmatpush1.msra.mxu0 %v59
    %220 = vmatprep.subr.mxu0 0.0
    %221 = vmatpush1.msra.mxu0 %v60
    %222 = vmatprep.subr.mxu0 0.0
    %223 = vmatpush1.msra.mxu0 %v61
    %224 = vmatprep.subr.mxu0 0.0
    %225 = vmatpush1.msra.mxu0 %v62
    %226 = vmatprep.subr.mxu0 0.0
    %227 = vmatpush1.msra.mxu0 %v63
    %228 = vmatprep.subr.mxu0 0.0
    %229 = vmatpush1.msra.mxu0 %v64
    %230 = vmatprep.subr.mxu0 0.0
    %231 = vmatpush1.msra.mxu0 %v65
    %232 = vmatprep.subr.mxu0 0.0
    %233 = vmatpush1.msra.mxu0 %v66
    %234 = vmatprep.subr.mxu0 0.0
    %235 = vmatpush1.msra.mxu0 %v67
    %236 = vmatprep.subr.mxu0 0.0
    %237 = vmatpush1.msra.mxu0 %v68
    %238 = vmatprep.subr.mxu0 0.0
    %239 = vmatpush1.msra.mxu0 %v69
    %240 = vmatprep.subr.mxu0 0.0
    %241 = vmatpush1.msra.mxu0 %v70
    %242 = vmatprep.mubr.f32.mxu0 %v168
    %243 = vmatmul.mubr.f32.gmra.mrb[0].mxu0 %v167
    %v244 = vpop.f32.mrb[0].mxu0
    %v245 = vadd.f32 %v176, %v244
    %v246 = vpop.f32.mrb[0].mxu0
    %247 = vmatprep.mubr.f32.mxu0 %v170
    %248 = vmatmul.mubr.f32.gmra.mrb[0].mxu0 %v169
    %v249 = vpop.f32.mrb[0].mxu0
    %v250 = vadd.f32 %v176, %v249
    %v251 = vpop.f32.mrb[0].mxu0
    %252 = vdwg.mxu0
    %253 = vst.msk [vmem:[#allocation2] sm:$0xff] %vm83, %v245
    %254 = vst.msk [vmem:[#allocation2 + $0x8] sm:$0xff] %vm83, %v250
    // Predicated region
    $region22: #{tpu_custom_call.1} parent=1 // pred_check
      _
    $region23: #{tpu_custom_call.1} parent=1 // pred_check_branch
      %256 = sbr.rel (0) target = $region25
    $region24: #{tpu_custom_call.1} parent=1 // pred_region
      %s258 = ssub.s32 256, 256
      %259 = vsyncadd [#allocation3], %s258
      %s260 = sshll.u32 [#allocation2], 4
      %s261 = int_to_ptr.vmem [resolvable:$true] %s260
      %266 = dma.vmem_to_hbm [thread:$0]  %s261, 256, %s5, [#allocation3], 128, 128, 8
    $region25: #{tpu_custom_call.1} parent=1 // pred_fallthru
      _
    // Predicated region
    $region26: #{tpu_custom_call.1} parent=1 // pred_check
      _
    $region27: #{tpu_custom_call.1} parent=1 // pred_check_branch
      %268 = sbr.rel (0) target = $region29
    $region28: #{tpu_custom_call.1} parent=1 // pred_region
      %269 = dma.done [#allocation3], 256
    $region29: #{tpu_custom_call.1} parent=1 // pred_fallthru
      _
    %270 = vsyncpa [#allocation3], 1

</llo_original>
